<compile_context>
chip_gen: v6e
topology: v6e:2x2x1
jax: 0.10.0
libtpu: 0.0.40
codegen_flags: <defaults>
</compile_context>

<pallas_src>
import jax
import jax.numpy as jnp
from jax import lax
from jax.experimental import pallas as pl
from jax.experimental.pallas import tpu as pltpu

H = 128  # hidden size fixed by the module: nn.LSTM(embed_dim, 128, bidirectional=True)


# --------------------------------------------------------------------------- #
# Hardware-aware knobs
# --------------------------------------------------------------------------- #
def _vmem_limit_bytes():
    cap = None
    try:
        info = pltpu.get_tpu_info()
        cap = int(getattr(info, "vmem_capacity_bytes", 0)) or None
    except Exception:
        cap = None
    if cap is None:
        cap = 64 << 20  # conservative fallback (v7x per-TensorCore VMEM)
    return max(32 << 20, int(0.75 * cap))


def _use_fused_recurrence():
    # v5e/v5p MXU is 128-deep: two native K=128 per-direction matmuls beat a
    # K=256 block-diagonal matmul (half of whose MACs hit explicit zeros).
    try:
        kind = jax.devices()[0].device_kind.lower()
    except Exception:
        return True
    return "v5" not in kind


# --------------------------------------------------------------------------- #
# Kernel 1: fused time-parallel input projection  x @ [W_f | W_r] + [b_f | b_r]
#           -> bf16 gate tensors in HBM, chunked over time.
# --------------------------------------------------------------------------- #
def _proj_kernel(x_ref, w8_ref, b8_ref, gxf_ref, gxr_ref):
    tc, bp, h4 = gxf_ref.shape           # (Tc, Bp, 4H)
    g = jnp.dot(x_ref[...], w8_ref[...], preferred_element_type=jnp.float32)
    g = g + b8_ref[...]                  # biases folded in once, never again
    g = g.reshape(tc, bp, 2 * h4)
    gxf_ref[...] = g[:, :, :h4].astype(gxf_ref.dtype)
    gxr_ref[...] = g[:, :, h4:].astype(gxr_ref.dtype)


# --------------------------------------------------------------------------- #
# Kernel 2: bidirectional recurrence + pooling + FC head.
#   grid = (batch_tiles [parallel], time_chunks [arbitrary])
#   State (h, c, sum, max) lives in VMEM scratch across the chunk axis.
# --------------------------------------------------------------------------- #
def _make_recurrence_kernel(*, tc, s_true, pad_steps, fuse):
    H4 = 4 * H

    def kernel(gxf_ref, gxr_ref, whh_ref, wfc_ref, bfc_ref, out_ref,
               h2_s, cf_s, cr_s, sum_s, max_s):
        c = pl.program_id(1)
        n_c = pl.num_programs(1)

        @pl.when(c == 0)
        def _init():
            h2_s[...] = jnp.zeros_like(h2_s)
            cf_s[...] = jnp.zeros_like(cf_s)
            cr_s[...] = jnp.zeros_like(cr_s)
            sum_s[...] = jnp.zeros_like(sum_s)
            max_s[...] = jnp.full_like(max_s, -jnp.inf)

        whh = whh_ref[...]               # bf16 recurrent weights (hoisted)
        if not fuse:
            whh_f, whh_r = whh[0], whh[1]
        t0 = c * tc

        def step(l, carry):
            h2, c_f, c_r, s2, m2 = carry
            h2b = h2.astype(jnp.bfloat16)
            if fuse:
                # Fused (Bt, 2H) x (2H, 8H) block-diagonal matmul: K=256 fills
                # the 256-deep MXU on v6e/v7x; f32 accumulation.
                g_rec = jnp.dot(h2b, whh, preferred_element_type=jnp.float32)
                grf, grr = g_rec[:, :H4], g_rec[:, H4:]
            else:
                grf = jnp.dot(h2b[:, :H], whh_f, preferred_element_type=jnp.float32)
                grr = jnp.dot(h2b[:, H:], whh_r, preferred_element_type=jnp.float32)

            # Streamed bf16 gate chunks: fwd reads row l of chunk c, rev reads
            # row Tc-1-l of chunk Sc-1-c (chunk-reversal done by the BlockSpec).
            g_f = grf + gxf_ref[l].astype(jnp.float32)
            g_r = grr + gxr_ref[tc - 1 - l].astype(jnp.float32)

            # Gate order [i, f, o, g]: one sigmoid over 3H + one tanh over H / dir.
            sf = jax.nn.sigmoid(g_f[:, :3 * H])
            gf = jnp.tanh(g_f[:, 3 * H:])
            sr = jax.nn.sigmoid(g_r[:, :3 * H])
            gr = jnp.tanh(g_r[:, 3 * H:])

            c_f = sf[:, H:2 * H] * c_f + sf[:, :H] * gf
            c_r_new = sr[:, H:2 * H] * c_r + sr[:, :H] * gr
            h_f = sf[:, 2 * H:] * jnp.tanh(c_f)
            h_r = sr[:, 2 * H:] * jnp.tanh(c_r_new)

            if pad_steps > 0:
                # Ragged S: fwd pad steps sit at t >= s_true (excluded from the
                # pooling), rev pad steps sit at t < pad_steps (state clamped to
                # zero so the real reverse scan starts from a zero state).
                t = t0 + l
                vf = t < s_true
                vr = t >= pad_steps
                c_r = jnp.where(vr, c_r_new, 0.0)
                h_r = jnp.where(vr, h_r, 0.0)
                h2 = jnp.concatenate([h_f, h_r], axis=1)
                s2 = s2 + jnp.concatenate([jnp.where(vf, h_f, 0.0), h_r], axis=1)
                m2 = jnp.maximum(
                    m2,
                    jnp.concatenate([jnp.where(vf, h_f, -jnp.inf),
                                     jnp.where(vr, h_r, -jnp.inf)], axis=1))
            else:
                c_r = c_r_new
                h2 = jnp.concatenate([h_f, h_r], axis=1)
                s2 = s2 + h2
                m2 = jnp.maximum(m2, h2)
            return h2, c_f, c_r, s2, m2

        carry0 = (h2_s[...], cf_s[...], cr_s[...], sum_s[...], max_s[...])
        unroll = 2 if tc >= 2 else 1
        h2, c_f, c_r, s2, m2 = lax.fori_loop(0, tc, step, carry0, unroll=unroll)
        h2_s[...] = h2
        cf_s[...] = c_f
        cr_s[...] = c_r
        sum_s[...] = s2
        max_s[...] = m2

        @pl.when(c == n_c - 1)
        def _finish():
            # Pooling + lane-dense (128-wide) FC head; eval-mode dropout = identity.
            feat = jnp.concatenate([s2 * jnp.float32(1.0 / s_true), m2], axis=1)
            logits = (jnp.dot(feat, wfc_ref[...], preferred_element_type=jnp.float32)
                      + bfc_ref[...])
            out_ref[...] = logits.astype(out_ref.dtype)

    return kernel


# --------------------------------------------------------------------------- #
# Wrapper
# --------------------------------------------------------------------------- #
def simple_lstm_forward(tokens, params, *, time_chunk=None, batch_tile=64,
                        fuse_recurrent=None):
    B, S = tokens.shape
    assert S >= 1, "sequence length must be >= 1"
    E = params['embedding'].shape[1]
    C = params['b_fc'].shape[-1]
    C_pad = 128
    gate_dt = jnp.bfloat16

    if fuse_recurrent is None:
        fuse_recurrent = _use_fused_recurrence()

    # ---- batch padding / tiling (batch axis is the megacore-parallel grid axis)
    B8 = 8 * pl.cdiv(B, 8)
    Bt = min(batch_tile, B8)
    Bt = 8 * pl.cdiv(Bt, 8)
    Bp = Bt * pl.cdiv(B8, Bt)
    n_bt = Bp // Bt

    # ---- time chunking (gate chunks streamed HBM -> VMEM, double-buffered)
    if time_chunk is None:
        tc_cap = max(1, (4 << 20) // max(1, 4 * Bt * 4 * H * 2))
        Tc = max(1, min(S, 32, tc_cap))
    else:
        Tc = max(1, min(int(time_chunk), S))
    Sc = pl.cdiv(S, Tc)
    S_pad = Sc * Tc
    P = S_pad - S

    def perm_gates(w):
        # PyTorch gate order [i, f, g, o] -> [i, f, o, g] (sigmoid gates contiguous)
        return jnp.concatenate(
            [w[..., :2 * H], w[..., 3 * H:4 * H], w[..., 2 * H:3 * H]], axis=-1)

    # ---- embedding gather, time-major, zero-padded in time and batch
    tok_p = jnp.zeros((Bp, S), tokens.dtype).at[:B].set(tokens)
    x = jnp.take(params['embedding'].astype(jnp.float32), tok_p.T, axis=0)  # (S, Bp, E)
    if P > 0:
        x = jnp.concatenate([x, jnp.zeros((P, Bp, E), jnp.float32)], axis=0)
    x2 = x.reshape(S_pad * Bp, E)

    # ---- fused input-projection weights (one matmul for both directions)
    wih_f = perm_gates(params['w_ih_f']).astype(jnp.float32)
    wih_r = perm_gates(params['w_ih_r']).astype(jnp.float32)
    b_f = perm_gates(params['b_ih_f'] + params['b_hh_f']).astype(jnp.float32)
    b_r = perm_gates(params['b_ih_r'] + params['b_hh_r']).astype(jnp.float32)
    w8 = jnp.concatenate([wih_f, wih_r], axis=1)                    # (E, 8H)
    b8 = jnp.concatenate([b_f, b_r], axis=-1).reshape(1, 8 * H)     # (1, 8H)

    # ---- recurrent weights (bf16 at the MXU, f32 accumulate)
    whh_f = perm_gates(params['w_hh_f']).astype(jnp.float32)
    whh_r = perm_gates(params['w_hh_r']).astype(jnp.float32)
    if fuse_recurrent:
        z = jnp.zeros((H, 4 * H), jnp.float32)
        whh = jnp.concatenate(
            [jnp.concatenate([whh_f, z], axis=1),
             jnp.concatenate([z, whh_r], axis=1)], axis=0).astype(jnp.bfloat16)  # (2H, 8H)
        whh_spec = pl.BlockSpec((2 * H, 8 * H), lambda bt, c: (0, 0))
    else:
        whh = jnp.stack([whh_f, whh_r], axis=0).astype(jnp.bfloat16)             # (2, H, 4H)
        whh_spec = pl.BlockSpec((2, H, 4 * H), lambda bt, c: (0, 0, 0))

    # ---- lane-dense classifier (pad C -> 128 output lanes)
    wfc = jnp.zeros((4 * H, C_pad), jnp.float32).at[:, :C].set(
        params['w_fc'].astype(jnp.float32))
    bfc = jnp.zeros((1, C_pad), jnp.float32).at[0, :C].set(
        params['b_fc'].astype(jnp.float32))

    vmem_limit = _vmem_limit_bytes()

    # ---- pass 1: gate projections -> bf16 HBM tensors, chunked over time
    gxf, gxr = pl.pallas_call(
        _proj_kernel,
        out_shape=(jax.ShapeDtypeStruct((Sc, Tc, Bp, 4 * H), gate_dt),
                   jax.ShapeDtypeStruct((Sc, Tc, Bp, 4 * H), gate_dt)),
        grid=(Sc,),
        in_specs=[pl.BlockSpec((Tc * Bp, E), lambda c: (c, 0)),
                  pl.BlockSpec((E, 8 * H), lambda c: (0, 0)),
                  pl.BlockSpec((1, 8 * H), lambda c: (0, 0))],
        out_specs=[pl.BlockSpec((None, Tc, Bp, 4 * H), lambda c: (c, 0, 0, 0)),
                   pl.BlockSpec((None, Tc, Bp, 4 * H), lambda c: (c, 0, 0, 0))],
        compiler_params=pltpu.CompilerParams(
            dimension_semantics=("parallel",),
            vmem_limit_bytes=vmem_limit),
    )(x2, w8, b8)

    # ---- pass 2: recurrence (batch tiles parallel, time chunks sequential)
    rec_kernel = _make_recurrence_kernel(tc=Tc, s_true=S, pad_steps=P,
                                         fuse=fuse_recurrent)
    out = pl.pallas_call(
        rec_kernel,
        out_shape=jax.ShapeDtypeStruct((Bp, C_pad), jnp.float32),
        grid=(n_bt, Sc),
        in_specs=[
            # fwd gates: chunk c for this batch tile (auto double-buffered prefetch)
            pl.BlockSpec((None, Tc, Bt, 4 * H), lambda bt, c: (c, 0, bt, 0)),
            # rev gates: chunk Sc-1-c (within-chunk reversal done at read time)
            pl.BlockSpec((None, Tc, Bt, 4 * H), lambda bt, c: (Sc - 1 - c, 0, bt, 0)),
            whh_spec,
            pl.BlockSpec((4 * H, C_pad), lambda bt, c: (0, 0)),
            pl.BlockSpec((1, C_pad), lambda bt, c: (0, 0)),
        ],
        out_specs=pl.BlockSpec((Bt, C_pad), lambda bt, c: (bt, 0)),
        scratch_shapes=[
            pltpu.VMEM((Bt, 2 * H), jnp.float32),   # h2 = [h_f | h_r]
            pltpu.VMEM((Bt, H), jnp.float32),       # c_f
            pltpu.VMEM((Bt, H), jnp.float32),       # c_r
            pltpu.VMEM((Bt, 2 * H), jnp.float32),   # running sum
            pltpu.VMEM((Bt, 2 * H), jnp.float32),   # running max
        ],
        compiler_params=pltpu.CompilerParams(
            dimension_semantics=("parallel", "arbitrary"),
            vmem_limit_bytes=vmem_limit),
    )(gxf, gxr, whh, wfc, bfc)

    return out[:B, :C]


# --------------------------------------------------------------------------- #
# Pure-JAX reference (matches the PyTorch forward in eval mode)
# --------------------------------------------------------------------------- #
def reference_forward(tokens, params):
    emb = jnp.take(params['embedding'], tokens, axis=0)        # (B, S, E)
    B, S, E = emb.shape

    def run_dir(wih, whh, bih, bhh, reverse):
        xs = emb[:, ::-1, :] if reverse else emb
        h = jnp.zeros((B, H), jnp.float32)
        c = jnp.zeros((B, H), jnp.float32)
        outs = []
        for t in range(S):
            g = xs[:, t] @ wih + h @ whh + bih + bhh
            i = jax.nn.sigmoid(g[:, :H])
            f = jax.nn.sigmoid(g[:, H:2 * H])
            gg = jnp.tanh(g[:, 2 * H:3 * H])
            o = jax.nn.sigmoid(g[:, 3 * H:])
            c = f * c + i * gg
            h = o * jnp.tanh(c)
            outs.append(h)
        out = jnp.stack(outs, axis=1)                          # (B, S, H)
        return out[:, ::-1, :] if reverse else out

    of = run_dir(params['w_ih_f'], params['w_hh_f'],
                 params['b_ih_f'], params['b_hh_f'], False)
    orv = run_dir(params['w_ih_r'], params['w_hh_r'],
                  params['b_ih_r'], params['b_hh_r'], True)
    seq = jnp.concatenate([of, orv], axis=-1)                  # (B, S, 2H)
    avg_pool = seq.mean(axis=1)
    max_pool = seq.max(axis=1)
    feat = jnp.concatenate([avg_pool, max_pool], axis=1)       # (B, 4H)
    return feat @ params['w_fc'] + params['b_fc']


if __name__ == "__main__":
    V, E, C = 50, 32, 2   # vocab, embed_dim, num_classes

    key = jax.random.PRNGKey(0)
    ks = jax.random.split(key, 12)
    scale = jnp.float32(0.1)
    params = {
        'embedding': jax.random.normal(ks[0], (V, E), jnp.float32),
        'w_ih_f': scale * jax.random.normal(ks[1], (E, 4 * H), jnp.float32),
        'w_hh_f': scale * jax.random.normal(ks[2], (H, 4 * H), jnp.float32),
        'b_ih_f': scale * jax.random.normal(ks[3], (4 * H,), jnp.float32),
        'b_hh_f': scale * jax.random.normal(ks[4], (4 * H,), jnp.float32),
        'w_ih_r': scale * jax.random.normal(ks[5], (E, 4 * H), jnp.float32),
        'w_hh_r': scale * jax.random.normal(ks[6], (H, 4 * H), jnp.float32),
        'b_ih_r': scale * jax.random.normal(ks[7], (4 * H,), jnp.float32),
        'b_hh_r': scale * jax.random.normal(ks[8], (4 * H,), jnp.float32),
        'w_fc': scale * jax.random.normal(ks[9], (4 * H, C), jnp.float32),
        'b_fc': scale * jax.random.normal(ks[10], (C,), jnp.float32),
    }

    # bf16 gate storage / bf16 recurrent matmul inputs -> loosened tolerance
    # against the f32 reference (accumulation and state stay f32).
    ATOL = RTOL = 2.5e-2

    def check(tokens, **kwargs):
        out = jax.block_until_ready(simple_lstm_forward(tokens, params, **kwargs))
        ref = reference_forward(tokens, params)
        assert out.shape == ref.shape, (out.shape, ref.shape)
        if not bool(jnp.allclose(out, ref, atol=ATOL, rtol=RTOL)):
            raise AssertionError(f"Pallas kernel mismatch:\n{out}\nvs\n{ref}")

    # Config A: B=2, S=8, explicit 2-chunk streaming, fused (K=256) recurrence.
    tokens_a = jax.random.randint(ks[11], (2, 8), 0, V, dtype=jnp.int32)
    check(tokens_a, time_chunk=4, fuse_recurrent=True)

    # Config B: ragged S (S=6 padded to 8, 2 pad steps) + per-direction (v5e-style)
    # recurrent matmuls.
    tokens_b = jax.random.randint(jax.random.PRNGKey(1), (3, 6), 0, V, dtype=jnp.int32)
    check(tokens_b, time_chunk=4, fuse_recurrent=False)

    # Config C: fully automatic knobs (single chunk, device-selected matmul shape).
    check(tokens_a)

    print("KERNEL_OK")
</pallas_src>

<mosaic_0001>
module attributes {stable_mosaic.version = 11 : i64} {
  func.func @_proj_kernel(%arg0: i32, %arg1: memref<32x32xf32, #tpu.memory_space<vmem>>, %arg2: memref<32x1024xf32, #tpu.memory_space<vmem>>, %arg3: memref<1x1024xf32, #tpu.memory_space<vmem>>, %arg4: memref<1x4x8x512xbf16, #tpu.memory_space<vmem>>, %arg5: memref<1x4x8x512xbf16, #tpu.memory_space<vmem>>) attributes {dimension_semantics = [#tpu.dimension_semantics<parallel>], iteration_bounds = array<i64: 2>, scalar_prefetch = 0 : i64, scratch_operands = 0 : i64, tpu.core_type = #tpu.core_type<tc>, window_params = [{transform_indices = @transform_0, window_bounds = array<i64: 32, 32>}, {pipeline_mode = #tpu.pipeline_mode<synchronous>, transform_indices = @transform_1, window_bounds = array<i64: 32, 1024>}, {pipeline_mode = #tpu.pipeline_mode<synchronous>, transform_indices = @transform_2, window_bounds = array<i64: 1, 1024>}, {transform_indices = @transform_3, window_bounds = array<i64: 1, 4, 8, 512>}, {transform_indices = @transform_4, window_bounds = array<i64: 1, 4, 8, 512>}]} {
    %c0 = arith.constant 0 : index
    %c0_0 = arith.constant 0 : index
    %0 = vector.load %arg1[%c0, %c0_0] : memref<32x32xf32, #tpu.memory_space<vmem>>, vector<32x32xf32>
    %c0_1 = arith.constant 0 : index
    %c0_2 = arith.constant 0 : index
    %1 = vector.load %arg2[%c0_1, %c0_2] : memref<32x1024xf32, #tpu.memory_space<vmem>>, vector<32x1024xf32>
    %cst = arith.constant dense<0.000000e+00> : vector<32x1024xf32>
    %2 = tpu.matmul %0, %1, %cst {dimension_numbers = #tpu.dot_dimension_numbers<[1], [0], [0], [1], [0, 0, 1, 1], [], []>} : vector<32x32xf32>, vector<32x1024xf32>, vector<32x1024xf32> -> vector<32x1024xf32>
    %c0_3 = arith.constant 0 : index
    %c0_4 = arith.constant 0 : index
    %3 = vector.load %arg3[%c0_3, %c0_4] : memref<1x1024xf32, #tpu.memory_space<vmem>>, vector<1x1024xf32>
    %4 = vector.broadcast %3 : vector<1x1024xf32> to vector<32x1024xf32>
    %5 = arith.addf %2, %4 : vector<32x1024xf32>
    %6 = vector.shape_cast %5 : vector<32x1024xf32> to vector<4x8x1024xf32>
    %7 = vector.extract_strided_slice %6 {offsets = [0, 0, 0], sizes = [4, 8, 512], strides = [1, 1, 1]} : vector<4x8x1024xf32> to vector<4x8x512xf32>
    %8 = arith.truncf %7 : vector<4x8x512xf32> to vector<4x8x512xbf16>
    %c0_5 = arith.constant 0 : index
    %c0_6 = arith.constant 0 : index
    %c0_7 = arith.constant 0 : index
    %c0_8 = arith.constant 0 : index
    %9 = vector.load %arg4[%c0_5, %c0_6, %c0_7, %c0_8] : memref<1x4x8x512xbf16, #tpu.memory_space<vmem>>, vector<1x4x8x512xbf16>
    %10 = vector.shape_cast %9 : vector<1x4x8x512xbf16> to vector<4x8x512xbf16>
    %11 = vector.shape_cast %8 : vector<4x8x512xbf16> to vector<1x4x8x512xbf16>
    tpu.vector_store %arg4[%c0_5, %c0_6, %c0_7, %c0_8], %11 {strides = array<i32>} : memref<1x4x8x512xbf16, #tpu.memory_space<vmem>>, vector<1x4x8x512xbf16>,
    %12 = vector.extract_strided_slice %6 {offsets = [0, 0, 512], sizes = [4, 8, 512], strides = [1, 1, 1]} : vector<4x8x1024xf32> to vector<4x8x512xf32>
    %13 = arith.truncf %12 : vector<4x8x512xf32> to vector<4x8x512xbf16>
    %c0_9 = arith.constant 0 : index
    %c0_10 = arith.constant 0 : index
    %c0_11 = arith.constant 0 : index
    %c0_12 = arith.constant 0 : index
    %14 = vector.load %arg5[%c0_9, %c0_10, %c0_11, %c0_12] : memref<1x4x8x512xbf16, #tpu.memory_space<vmem>>, vector<1x4x8x512xbf16>
    %15 = vector.shape_cast %14 : vector<1x4x8x512xbf16> to vector<4x8x512xbf16>
    %16 = vector.shape_cast %13 : vector<4x8x512xbf16> to vector<1x4x8x512xbf16>
    tpu.vector_store %arg5[%c0_9, %c0_10, %c0_11, %c0_12], %16 {strides = array<i32>} : memref<1x4x8x512xbf16, #tpu.memory_space<vmem>>, vector<1x4x8x512xbf16>,
    return
  }
  func.func @transform_0(%arg0: i32) -> (i32, i32) {
    %c0_i32 = arith.constant 0 : i32
    %c0_i32_0 = arith.constant 0 : i32
    return %arg0, %c0_i32 : i32, i32
  }
  func.func @transform_1(%arg0: i32) -> (i32, i32) {
    %c0_i32 = arith.constant 0 : i32
    %c0_i32_0 = arith.constant 0 : i32
    %c0_i32_1 = arith.constant 0 : i32
    return %c0_i32, %c0_i32_0 : i32, i32
  }
  func.func @transform_2(%arg0: i32) -> (i32, i32) {
    %c0_i32 = arith.constant 0 : i32
    %c0_i32_0 = arith.constant 0 : i32
    %c0_i32_1 = arith.constant 0 : i32
    return %c0_i32, %c0_i32_0 : i32, i32
  }
  func.func @transform_3(%arg0: i32) -> (i32, i32, i32, i32) {
    %c0_i32 = arith.constant 0 : i32
    %c0_i32_0 = arith.constant 0 : i32
    %c0_i32_1 = arith.constant 0 : i32
    %c0_i32_2 = arith.constant 0 : i32
    return %arg0, %c0_i32, %c0_i32_0, %c0_i32_1 : i32, i32, i32, i32
  }
  func.func @transform_4(%arg0: i32) -> (i32, i32, i32, i32) {
    %c0_i32 = arith.constant 0 : i32
    %c0_i32_0 = arith.constant 0 : i32
    %c0_i32_1 = arith.constant 0 : i32
    %c0_i32_2 = arith.constant 0 : i32
    return %arg0, %c0_i32, %c0_i32_0, %c0_i32_1 : i32, i32, i32, i32
  }
}

</mosaic_0001>

<llo_original>
// kernel: tpu_custom_call.1
$region0: #{tpu_custom_call.1}
  #allocation0 [shape = 'u32[]', space=smem, size = 0x4, offset = 0x4, fixed_abs, tag = 'smem constant byte address 0x4 - core index']
  #allocation1 [shape = 'u32[144,128]{1,0:T(1,128)}', space=vmem, size = 0x12000, scoped, tag = 'internal scratch']
  %s0 = inlined_call_operand.vmem [shape: f32[64,32], index: 0, kind: input, shape index: {}]
  %s1 = inlined_call_operand.hbm [shape: f32[32,1024], index: 1, kind: input, shape index: {}]
  %s2 = inlined_call_operand.vmem [shape: f32[1,1024], index: 2, kind: input, shape index: {}]
  %s3 = inlined_call_operand.hbm [shape: bf16[2,4,8,512], index: 3, kind: output, shape index: {0}]
  %s4 = inlined_call_operand.hbm [shape: bf16[2,4,8,512], index: 4, kind: output, shape index: {1}]
  %5 = xla_tuple %s3, %s4
  %s6 = sld [smem:[#allocation0]]
  $region57: #{tpu_custom_call.1} parent=0
    _
  %s8 = ssub.s32 1, %s6
  %s9 = scalar_select 0, %s8, %s6
  $region1: #{tpu_custom_call.1} parent=0
    #allocation2 [shape = 'u8[131072]{0}', space=vmem, size = 0x20000, scoped, tag = 'input window, operand 1, single buffered']
    #allocation3 [shape = 's32[2]{0}', space=sflag, size = 0x8, scoped, tag = 'scoped memory for tpu_custom_call.1']
    #allocation4 [shape = 's32[2]{0}', space=sflag, size = 0x8, scoped, tag = 'scoped memory for tpu_custom_call.1']
    #allocation5 [shape = 'u8[65536]{0}', space=vmem, size = 0x10000, scoped, tag = 'output window, operand 0']
    #allocation6 [shape = 'u8[65536]{0}', space=vmem, size = 0x10000, scoped, tag = 'output window, operand 1']
    #allocation7 [shape = 's32[2]{0}', space=sflag, size = 0x8, scoped, tag = 'scoped memory for tpu_custom_call.1']
    %10 = vsyncpa [#allocation3], 0
    %11 = vsyncpa [#allocation4], 0
    %s12 = scalar_lea.sflag [#allocation4], 1
    %13 = vsyncpa %s12, 0
    %14 = vsyncpa [#allocation7], 0
    %s15 = scalar_lea.sflag [#allocation7], 1
    %16 = vsyncpa %s15, 0
    loop: start=0, step=1, limit=4
    $region2: #{tpu_custom_call.1} parent=1 // loop_pre_header
      _
    $region3: #{tpu_custom_call.1} parent=1 // loop_header
      %s18 = sphi 0, %s22
      %p19 = scmp.ge.s32.totalorder %s18, 4
      %s28 = sphi 0, %s30
      %s31 = sphi 0, %s28
      %s32 = sphi 0, %s31
      %s48 = sphi 0, %s32
      %s52 = sphi 0, %s52
      %s54 = sphi 0, %s52
      %s55 = sphi 0, %s54
      %s69 = sphi 0, %s55
      %s73 = sphi 0, %s73
      %s75 = sphi 0, %s73
      %s76 = sphi 0, %s75
      %s90 = sphi 0, %s76
      %s96 = sphi 0, %s98
      %s99 = sphi 0, %s96
      %s100 = sphi 0, %s99
      %s116 = sphi 0, %s100
      %s122 = sphi 0, %s124
      %s125 = sphi 0, %s122
      %s126 = sphi 0, %s125
      %s142 = sphi 0, %s126
    $region4: #{tpu_custom_call.1} parent=1 // loop_header_branch
      %21 = sbr.rel (%p19) target = $region8
    $region5: #{tpu_custom_call.1} parent=1 // loop_body
      %s23 = ssub.s32 %s18, 1
      %s24 = ssub.s32 %s18, 2
      %s25 = sadd.s32 %s18, 1
      %s26 = ssub.s32 %s18, %s25
      %p27 = scmp.eq.s32.totalorder %s26, 0
      %s29 = sadd.s32 %s28, 1
      %s30 = scalar_select %p27, %s28, %s29
      %p33 = pneg %p27
      %p34 = scmp.eq.s32.totalorder %s18, 1
      %p35 = por %p33, %p34
      %p36 = scmp.ne.s32.totalorder %s28, %s31
      %p37 = scmp.eq.s32.totalorder %s18, 0
      %p38 = por %p36, %p37
      %p39 = scmp.ne.s32.totalorder %s28, %s31
      %p40 = scmp.eq.s32.totalorder %s23, 1
      %p41 = por %p39, %p40
      %p42 = scmp.ne.s32.totalorder %s31, %s32
      %p43 = scmp.eq.s32.totalorder %s23, 0
      %p44 = por %p42, %p43
      %p45 = scmp.ne.s32.totalorder %s31, %s32
      %p46 = scmp.eq.s32.totalorder %s24, 1
      %p47 = por %p45, %p46
      %p49 = scmp.ne.s32.totalorder %s32, %s48
      %p50 = scmp.eq.s32.totalorder %s24, 0
      %p51 = por %p49, %p50
      %s53 = sadd.s32 %s52, 1
      %p56 = scmp.eq.s32.totalorder %s18, 1
      %p57 = scmp.ne.s32.totalorder %s52, %s54
      %p58 = scmp.eq.s32.totalorder %s18, 0
      %p59 = por %p57, %p58
      %p60 = scmp.ne.s32.totalorder %s52, %s54
      %p61 = scmp.eq.s32.totalorder %s23, 1
      %p62 = por %p60, %p61
      %p63 = scmp.ne.s32.totalorder %s54, %s55
      %p64 = scmp.eq.s32.totalorder %s23, 0
      %p65 = por %p63, %p64
      %p66 = scmp.ne.s32.totalorder %s54, %s55
      %p67 = scmp.eq.s32.totalorder %s24, 1
      %p68 = por %p66, %p67
      %p70 = scmp.ne.s32.totalorder %s55, %s69
      %p71 = scmp.eq.s32.totalorder %s24, 0
      %p72 = por %p70, %p71
      %s74 = sadd.s32 %s73, 1
      %p77 = scmp.eq.s32.totalorder %s18, 1
      %p78 = scmp.ne.s32.totalorder %s73, %s75
      %p79 = scmp.eq.s32.totalorder %s18, 0
      %p80 = por %p78, %p79
      %p81 = scmp.ne.s32.totalorder %s73, %s75
      %p82 = scmp.eq.s32.totalorder %s23, 1
      %p83 = por %p81, %p82
      %p84 = scmp.ne.s32.totalorder %s75, %s76
      %p85 = scmp.eq.s32.totalorder %s23, 0
      %p86 = por %p84, %p85
      %p87 = scmp.ne.s32.totalorder %s75, %s76
      %p88 = scmp.eq.s32.totalorder %s24, 1
      %p89 = por %p87, %p88
      %p91 = scmp.ne.s32.totalorder %s76, %s90
      %p92 = scmp.eq.s32.totalorder %s24, 0
      %p93 = por %p91, %p92
      %s94 = ssub.s32 %s18, %s25
      %p95 = scmp.eq.s32.totalorder %s94, 0
      %s97 = sadd.s32 %s96, 1
      %s98 = scalar_select %p95, %s96, %s97
      %p101 = pneg %p95
      %p102 = scmp.eq.s32.totalorder %s18, 1
      %p103 = por %p101, %p102
      %p104 = scmp.ne.s32.totalorder %s96, %s99
      %p105 = scmp.eq.s32.totalorder %s18, 0
      %p106 = por %p104, %p105
      %p107 = scmp.ne.s32.totalorder %s96, %s99
      %p108 = scmp.eq.s32.totalorder %s23, 1
      %p109 = por %p107, %p108
      %p110 = scmp.ne.s32.totalorder %s99, %s100
      %p111 = scmp.eq.s32.totalorder %s23, 0
      %p112 = por %p110, %p111
      %p113 = scmp.ne.s32.totalorder %s99, %s100
      %p114 = scmp.eq.s32.totalorder %s24, 1
      %p115 = por %p113, %p114
      %p117 = scmp.ne.s32.totalorder %s100, %s116
      %p118 = scmp.eq.s32.totalorder %s24, 0
      %p119 = por %p117, %p118
      %s120 = ssub.s32 %s18, %s25
      %p121 = scmp.eq.s32.totalorder %s120, 0
      %s123 = sadd.s32 %s122, 1
      %s124 = scalar_select %p121, %s122, %s123
      %p127 = pneg %p121
      %p128 = scmp.eq.s32.totalorder %s18, 1
      %p129 = por %p127, %p128
      %p130 = scmp.ne.s32.totalorder %s122, %s125
      %p131 = scmp.eq.s32.totalorder %s18, 0
      %p132 = por %p130, %p131
      %p133 = scmp.ne.s32.totalorder %s122, %s125
      %p134 = scmp.eq.s32.totalorder %s23, 1
      %p135 = por %p133, %p134
      %p136 = scmp.ne.s32.totalorder %s125, %s126
      %p137 = scmp.eq.s32.totalorder %s23, 0
      %p138 = por %p136, %p137
      %p139 = scmp.ne.s32.totalorder %s125, %s126
      %p140 = scmp.eq.s32.totalorder %s24, 1
      %p141 = por %p139, %p140
      %p143 = scmp.ne.s32.totalorder %s126, %s142
      %p144 = scmp.eq.s32.totalorder %s24, 0
      %p145 = por %p143, %p144
      %p146 = scmp.le.s32.totalorder 1, %s18
      %p147 = scmp.lt.s32.totalorder %s18, 3
      %p148 = pnand %p146, %p147
      %p149 = pneg %p148
      // Predicated region
      $region9: #{tpu_custom_call.1} parent=5 // pred_check
        _
      $region10: #{tpu_custom_call.1} parent=5 // pred_check_branch
        %151 = sbr.rel (%p148) target = $region12
      $region11: #{tpu_custom_call.1} parent=5 // pred_region
        %s152 = ssub.s32 %s18, 1
        // Predicated region
        $region13: #{tpu_custom_call.1} parent=11 // pred_check
          %p153 = pneg %p65
        $region14: #{tpu_custom_call.1} parent=11 // pred_check_branch
          %155 = sbr.rel (%p153) target = $region16
        $region15: #{tpu_custom_call.1} parent=11 // pred_region
          %s157 = ssub.s32 4096, 4096
          %158 = vsyncadd [#allocation3], %s157
          %s159 = sshll.u32 [#allocation2], 4
          %s160 = int_to_ptr.vmem [resolvable:$true] %s159
          %165 = dma.hbm_to_vmem [thread:$0]  %s1, 4096, %s160, [#allocation3], 1024, 1024, 64
        $region16: #{tpu_custom_call.1} parent=11 // pred_fallthru
          _
        // Predicated region
        $region17: #{tpu_custom_call.1} parent=11 // pred_check
          %p166 = pneg %p86
        $region18: #{tpu_custom_call.1} parent=11 // pred_check_branch
          %168 = sbr.rel (%p166) target = $region20
        $region19: #{tpu_custom_call.1} parent=11 // pred_region
          _
        $region20: #{tpu_custom_call.1} parent=11 // pred_fallthru
          _
      $region12: #{tpu_custom_call.1} parent=5 // pred_fallthru
        _
      %p169 = scmp.lt.s32.totalorder %s18, 2
      // Predicated region
      $region21: #{tpu_custom_call.1} parent=5 // pred_check
        %p170 = pneg %p169
      $region22: #{tpu_custom_call.1} parent=5 // pred_check_branch
        %172 = sbr.rel (%p170) target = $region24
      $region23: #{tpu_custom_call.1} parent=5 // pred_region
        // Predicated region
        $region25: #{tpu_custom_call.1} parent=23 // pred_check
          %p173 = pneg %p38
        $region26: #{tpu_custom_call.1} parent=23 // pred_check_branch
          %175 = sbr.rel (%p173) target = $region28
        $region27: #{tpu_custom_call.1} parent=23 // pred_region
          %s176 = smul.u32 4, %s18
          %p177 = scmp.lt.s32.totalorder %s176, 7
          %s178 = scalar_select %p177, %s176, 7
          %s179 = smul.addr %s178, 8
          %s180 = scalar_lea.vmem %s0, %s179
          %s181 = smul.u32 4, %s18
        $region28: #{tpu_custom_call.1} parent=23 // pred_fallthru
          _
      $region24: #{tpu_custom_call.1} parent=5 // pred_fallthru
        _
      %p182 = scmp.le.s32.totalorder 1, %s18
      %p183 = scmp.lt.s32.totalorder %s18, 3
      %p184 = pnand %p182, %p183
      %p185 = pneg %p184
      // Predicated region
      $region29: #{tpu_custom_call.1} parent=5 // pred_check
        _
      $region30: #{tpu_custom_call.1} parent=5 // pred_check_branch
        %187 = sbr.rel (%p184) target = $region32
      $region31: #{tpu_custom_call.1} parent=5 // pred_region
        %s188 = ssub.s32 %s18, 1
        // Predicated region
        $region33: #{tpu_custom_call.1} parent=31 // pred_check
          %p189 = pneg %p65
        $region34: #{tpu_custom_call.1} parent=31 // pred_check_branch
          %191 = sbr.rel (%p189) target = $region36
        $region35: #{tpu_custom_call.1} parent=31 // pred_region
          %192 = dma.done [#allocation3], 4096
        $region36: #{tpu_custom_call.1} parent=31 // pred_fallthru
          _
        %s193 = smul.u32 4, %s23
        %p194 = scmp.lt.s32.totalorder %s193, 7
        %s195 = scalar_select %p194, %s193, 7
        %s196 = smul.addr %s195, 8
        %s197 = scalar_lea.vmem %s0, %s196
        %p198 = pneg %p44
        %p199 = pneg %p41
        %p200 = pneg %p65
        %p201 = pneg %p62
        %p202 = pneg %p86
        %p203 = pneg %p83
        %p204 = pneg %p112
        %p205 = pneg %p109
        %s206 = sand.u32 %s99, 1
        %s207 = scalar_lea.sflag [#allocation4], %s206
        %s208 = sand.u32 %s99, 1
        %s209 = smul.addr %s208, 64
        %s210 = scalar_lea.vmem [#allocation5], %s209
        %p211 = pneg %p138
        %p212 = pneg %p135
        %s213 = sand.u32 %s125, 1
        %s214 = scalar_lea.sflag [#allocation7], %s213
        %s215 = sand.u32 %s125, 1
        %s216 = smul.addr %s215, 64
        %s217 = scalar_lea.vmem [#allocation6], %s216
        %s218 = smul.u32 4, %s23
        %p219 = scmp.lt.s32.totalorder %s218, 7
        %s220 = scalar_select %p219, %s218, 7
        %s221 = smul.addr %s220, 8
        %s222 = scalar_lea.vmem %s0, %s221
        %s223 = smul.u32 4, %s23
        %v224 = vld [vmem:[%s222] sm:$0xff]
        %v225 = vld [vmem:[%s222 + $0x8] sm:$0xff]
        %v226 = vld [vmem:[%s222 + $0x10] sm:$0xff]
        %v227 = vld [vmem:[%s222 + $0x18] sm:$0xff]
        %v228 = vld [vmem:[#allocation2] sm:$0xff]
        %v229 = vld [vmem:[#allocation2 + $0x8] sm:$0xff]
        %v230 = vld [vmem:[#allocation2 + $0x10] sm:$0xff]
        %v231 = vld [vmem:[#allocation2 + $0x18] sm:$0xff]
        %v232 = vld [vmem:[#allocation2 + $0x20] sm:$0xff]
        %v233 = vld [vmem:[#allocation2 + $0x28] sm:$0xff]
        %v234 = vld [vmem:[#allocation2 + $0x30] sm:$0xff]
        %v235 = vld [vmem:[#allocation2 + $0x38] sm:$0xff]
        %v236 = vld [vmem:[#allocation2 + $0x40] sm:$0xff]
        %v237 = vld [vmem:[#allocation2 + $0x48] sm:$0xff]
        %v238 = vld [vmem:[#allocation2 + $0x50] sm:$0xff]
        %v239 = vld [vmem:[#allocation2 + $0x58] sm:$0xff]
        %v240 = vld [vmem:[#allocation2 + $0x60] sm:$0xff]
        %v241 = vld [vmem:[#allocation2 + $0x68] sm:$0xff]
        %v242 = vld [vmem:[#allocation2 + $0x70] sm:$0xff]
        %v243 = vld [vmem:[#allocation2 + $0x78] sm:$0xff]
        %v244 = vld [vmem:[#allocation2 + $0x80] sm:$0xff]
        %v245 = vld [vmem:[#allocation2 + $0x88] sm:$0xff]
        %v246 = vld [vmem:[#allocation2 + $0x90] sm:$0xff]
        %v247 = vld [vmem:[#allocation2 + $0x98] sm:$0xff]
        %v248 = vld [vmem:[#allocation2 + $0xa0] sm:$0xff]
        %v249 = vld [vmem:[#allocation2 + $0xa8] sm:$0xff]
        %v250 = vld [vmem:[#allocation2 + $0xb0] sm:$0xff]
        %v251 = vld [vmem:[#allocation2 + $0xb8] sm:$0xff]
        %v252 = vld [vmem:[#allocation2 + $0xc0] sm:$0xff]
        %v253 = vld [vmem:[#allocation2 + $0xc8] sm:$0xff]
        %v254 = vld [vmem:[#allocation2 + $0xd0] sm:$0xff]
        %v255 = vld [vmem:[#allocation2 + $0xd8] sm:$0xff]
        %v256 = vld [vmem:[#allocation2 + $0xe0] sm:$0xff]
        %v257 = vld [vmem:[#allocation2 + $0xe8] sm:$0xff]
        %v258 = vld [vmem:[#allocation2 + $0xf0] sm:$0xff]
        %v259 = vld [vmem:[#allocation2 + $0xf8] sm:$0xff]
        %v260 = vld [vmem:[%s2] sm:$0xff]
        %v262 = vlaneseq
        %v263 = vshrl.u32 %v262, 7
        %v264 = vsub.s32 0, %v263
        %v265 = vrot.slane %v260, %v264
        %v266 = vlaneseq
        %v267 = vshrl.u32 %v266, 7
        %v268 = vsub.s32 1, %v267
        %v269 = vrot.slane %v260, %v268
        %v270 = vlaneseq
        %v271 = vshrl.u32 %v270, 7
        %v272 = vsub.s32 2, %v271
        %v273 = vrot.slane %v260, %v272
        %v274 = vlaneseq
        %v275 = vshrl.u32 %v274, 7
        %v276 = vsub.s32 3, %v275
        %v277 = vrot.slane %v260, %v276
        %v278 = vlaneseq
        %v279 = vshrl.u32 %v278, 7
        %v280 = vsub.s32 4, %v279
        %v281 = vrot.slane %v260, %v280
        %v282 = vlaneseq
        %v283 = vshrl.u32 %v282, 7
        %v284 = vsub.s32 5, %v283
        %v285 = vrot.slane %v260, %v284
        %v286 = vlaneseq
        %v287 = vshrl.u32 %v286, 7
        %v288 = vsub.s32 6, %v287
        %v289 = vrot.slane %v260, %v288
        %v290 = vlaneseq
        %v291 = vshrl.u32 %v290, 7
        %v292 = vsub.s32 7, %v291
        %v293 = vrot.slane %v260, %v292
        %vm302 = vcmask 261120
        %v304 = vsel %vm302, %v224, 0
        %v307 = vsel %vm302, %v225, 0
        %v310 = vsel %vm302, %v226, 0
        %v313 = vsel %vm302, %v227, 0
        %315 = vmatprep.subr.mxu0 0.0
        %316 = vmatpush1.msra.mxu0 0.0
        %317 = vmatprep.subr.mxu0 0.0
        %318 = vmatpush1.msra.mxu0 0.0
        %319 = vmatprep.subr.mxu0 0.0
        %320 = vmatpush1.msra.mxu0 0.0
        %321 = vmatprep.subr.mxu0 0.0
        %322 = vmatpush1.msra.mxu0 0.0
        %323 = vmatprep.subr.mxu0 0.0
        %324 = vmatpush1.msra.mxu0 0.0
        %325 = vmatprep.subr.mxu0 0.0
        %326 = vmatpush1.msra.mxu0 0.0
        %327 = vmatprep.subr.mxu0 0.0
        %328 = vmatpush1.msra.mxu0 0.0
        %329 = vmatprep.subr.mxu0 0.0
        %330 = vmatpush1.msra.mxu0 0.0
        %331 = vmatprep.subr.mxu0 0.0
        %332 = vmatpush1.msra.mxu0 0.0
        %333 = vmatprep.subr.mxu0 0.0
        %334 = vmatpush1.msra.mxu0 0.0
        %335 = vmatprep.subr.mxu0 0.0
        %336 = vmatpush1.msra.mxu0 0.0
        %337 = vmatprep.subr.mxu0 0.0
        %338 = vmatpush1.msra.mxu0 0.0
        %339 = vmatprep.subr.mxu0 %v253
        %340 = vmatpush1.msra.mxu0 %v252
        %341 = vmatprep.subr.mxu0 %v245
        %342 = vmatpush1.msra.mxu0 %v244
        %343 = vmatprep.subr.mxu0 %v237
        %344 = vmatpush1.msra.mxu0 %v236
        %345 = vmatprep.subr.mxu0 %v229
        %346 = vmatpush1.msra.mxu0 %v228
        %347 = vmatprep.subr.mxu0 0.0
        %348 = vmatpush2.msra.mxu0 0.0
        %349 = vmatprep.subr.mxu0 0.0
        %350 = vmatpush2.msra.mxu0 0.0
        %351 = vmatprep.subr.mxu0 0.0
        %352 = vmatpush2.msra.mxu0 0.0
        %353 = vmatprep.subr.mxu0 0.0
        %354 = vmatpush2.msra.mxu0 0.0
        %355 = vmatprep.subr.mxu0 0.0
        %356 = vmatpush2.msra.mxu0 0.0
        %357 = vmatprep.subr.mxu0 0.0
        %358 = vmatpush2.msra.mxu0 0.0
        %359 = vmatprep.subr.mxu0 0.0
        %360 = vmatpush2.msra.mxu0 0.0
        %361 = vmatprep.subr.mxu0 0.0
        %362 = vmatpush2.msra.mxu0 0.0
        %363 = vmatprep.subr.mxu0 0.0
        %364 = vmatpush2.msra.mxu0 0.0
        %365 = vmatprep.subr.mxu0 0.0
        %366 = vmatpush2.msra.mxu0 0.0
        %367 = vmatprep.subr.mxu0 0.0
        %368 = vmatpush2.msra.mxu0 0.0
        %369 = vmatprep.subr.mxu0 0.0
        %370 = vmatpush2.msra.mxu0 0.0
        %371 = vmatprep.subr.mxu0 0.0
        %372 = vmatpush2.msra.mxu0 0.0
        %373 = vmatprep.subr.mxu0 0.0
        %374 = vmatpush2.msra.mxu0 0.0
        %375 = vmatprep.subr.mxu0 0.0
        %376 = vmatpush2.msra.mxu0 0.0
        %377 = vmatprep.subr.mxu0 0.0
        %378 = vmatpush2.msra.mxu0 0.0
        %379 = vmatprep.mubr.f32.mxu0 0.0
        %380 = vmatmul.mubr.f32.gmra.mxu0 %v304
        %v381 = vpop.f32.mrf.mxu0
        %v382 = vadd.f32 %v265, %v381
        %v383 = vpop.f32.mrf.mxu0
        %v384 = vadd.f32 %v269, %v383
        %385 = vmatprep.mubr.f32.mxu0 0.0
        %386 = vmatmul.mubr.f32.gmra.mxu0 %v307
        %v387 = vpop.f32.mrf.mxu0
        %v388 = vadd.f32 %v265, %v387
        %v389 = vpop.f32.mrf.mxu0
        %v390 = vadd.f32 %v269, %v389
        %391 = vmatprep.mubr.f32.mxu0 0.0
        %392 = vmatmul.mubr.f32.gmra.mxu0 %v310
        %v393 = vpop.f32.mrf.mxu0
        %v394 = vadd.f32 %v265, %v393
        %v395 = vpop.f32.mrf.mxu0
        %v396 = vadd.f32 %v269, %v395
        %397 = vmatprep.mubr.f32.mxu0 0.0
        %398 = vmatmul.mubr.f32.gmra.mxu0 %v313
        %v399 = vpop.f32.mrf.mxu0
        %v400 = vadd.f32 %v265, %v399
        %v401 = vpop.f32.mrf.mxu0
        %v402 = vadd.f32 %v269, %v401
        %403 = vdwg.mxu0
        %404 = vmatprep.subr.mxu0 0.0
        %405 = vmatpush1.msra.mxu0 0.0
        %406 = vmatprep.subr.mxu0 0.0
        %407 = vmatpush1.msra.mxu0 0.0
        %408 = vmatprep.subr.mxu0 0.0
        %409 = vmatpush1.msra.mxu0 0.0
        %410 = vmatprep.subr.mxu0 0.0
        %411 = vmatpush1.msra.mxu0 0.0
        %412 = vmatprep.subr.mxu0 0.0
        %413 = vmatpush1.msra.mxu0 0.0
        %414 = vmatprep.subr.mxu0 0.0
        %415 = vmatpush1.msra.mxu0 0.0
        %416 = vmatprep.subr.mxu0 0.0
        %417 = vmatpush1.msra.mxu0 0.0
        %418 = vmatprep.subr.mxu0 0.0
        %419 = vmatpush1.msra.mxu0 0.0
        %420 = vmatprep.subr.mxu0 0.0
        %421 = vmatpush1.msra.mxu0 0.0
        %422 = vmatprep.subr.mxu0 0.0
        %423 = vmatpush1.msra.mxu0 0.0
        %424 = vmatprep.subr.mxu0 0.0
        %425 = vmatpush1.msra.mxu0 0.0
        %426 = vmatprep.subr.mxu0 0.0
        %427 = vmatpush1.msra.mxu0 0.0
        %428 = vmatprep.subr.mxu0 %v255
        %429 = vmatpush1.msra.mxu0 %v254
        %430 = vmatprep.subr.mxu0 %v247
        %431 = vmatpush1.msra.mxu0 %v246
        %432 = vmatprep.subr.mxu0 %v239
        %433 = vmatpush1.msra.mxu0 %v238
        %434 = vmatprep.subr.mxu0 %v231
        %435 = vmatpush1.msra.mxu0 %v230
        %436 = vmatprep.subr.mxu0 0.0
        %437 = vmatpush2.msra.mxu0 0.0
        %438 = vmatprep.subr.mxu0 0.0
        %439 = vmatpush2.msra.mxu0 0.0
        %440 = vmatprep.subr.mxu0 0.0
        %441 = vmatpush2.msra.mxu0 0.0
        %442 = vmatprep.subr.mxu0 0.0
        %443 = vmatpush2.msra.mxu0 0.0
        %444 = vmatprep.subr.mxu0 0.0
        %445 = vmatpush2.msra.mxu0 0.0
        %446 = vmatprep.subr.mxu0 0.0
        %447 = vmatpush2.msra.mxu0 0.0
        %448 = vmatprep.subr.mxu0 0.0
        %449 = vmatpush2.msra.mxu0 0.0
        %450 = vmatprep.subr.mxu0 0.0
        %451 = vmatpush2.msra.mxu0 0.0
        %452 = vmatprep.subr.mxu0 0.0
        %453 = vmatpush2.msra.mxu0 0.0
        %454 = vmatprep.subr.mxu0 0.0
        %455 = vmatpush2.msra.mxu0 0.0
        %456 = vmatprep.subr.mxu0 0.0
        %457 = vmatpush2.msra.mxu0 0.0
        %458 = vmatprep.subr.mxu0 0.0
        %459 = vmatpush2.msra.mxu0 0.0
        %460 = vmatprep.subr.mxu0 0.0
        %461 = vmatpush2.msra.mxu0 0.0
        %462 = vmatprep.subr.mxu0 0.0
        %463 = vmatpush2.msra.mxu0 0.0
        %464 = vmatprep.subr.mxu0 0.0
        %465 = vmatpush2.msra.mxu0 0.0
        %466 = vmatprep.subr.mxu0 0.0
        %467 = vmatpush2.msra.mxu0 0.0
        %468 = vmatprep.mubr.f32.mxu0 0.0
        %469 = vmatmul.mubr.f32.gmra.mxu0 %v304
        %v470 = vpop.f32.mrf.mxu0
        %v471 = vadd.f32 %v273, %v470
        %v472 = vpop.f32.mrf.mxu0
        %v473 = vadd.f32 %v277, %v472
        %474 = vmatprep.mubr.f32.mxu0 0.0
        %475 = vmatmul.mubr.f32.gmra.mxu0 %v307
        %v476 = vpop.f32.mrf.mxu0
        %v477 = vadd.f32 %v273, %v476
        %v478 = vpop.f32.mrf.mxu0
        %v479 = vadd.f32 %v277, %v478
        %480 = vmatprep.mubr.f32.mxu0 0.0
        %481 = vmatmul.mubr.f32.gmra.mxu0 %v310
        %v482 = vpop.f32.mrf.mxu0
        %v483 = vadd.f32 %v273, %v482
        %v484 = vpop.f32.mrf.mxu0
        %v485 = vadd.f32 %v277, %v484
        %486 = vmatprep.mubr.f32.mxu0 0.0
        %487 = vmatmul.mubr.f32.gmra.mxu0 %v313
        %v488 = vpop.f32.mrf.mxu0
        %v489 = vadd.f32 %v273, %v488
        %v490 = vpop.f32.mrf.mxu0
        %v491 = vadd.f32 %v277, %v490
        %492 = vdwg.mxu0
        %493 = vmatprep.subr.mxu0 0.0
        %494 = vmatpush1.msra.mxu0 0.0
        %495 = vmatprep.subr.mxu0 0.0
        %496 = vmatpush1.msra.mxu0 0.0
        %497 = vmatprep.subr.mxu0 0.0
        %498 = vmatpush1.msra.mxu0 0.0
        %499 = vmatprep.subr.mxu0 0.0
        %500 = vmatpush1.msra.mxu0 0.0
        %501 = vmatprep.subr.mxu0 0.0
        %502 = vmatpush1.msra.mxu0 0.0
        %503 = vmatprep.subr.mxu0 0.0
        %504 = vmatpush1.msra.mxu0 0.0
        %505 = vmatprep.subr.mxu0 0.0
        %506 = vmatpush1.msra.mxu0 0.0
        %507 = vmatprep.subr.mxu0 0.0
        %508 = vmatpush1.msra.mxu0 0.0
        %509 = vmatprep.subr.mxu0 0.0
        %510 = vmatpush1.msra.mxu0 0.0
        %511 = vmatprep.subr.mxu0 0.0
        %512 = vmatpush1.msra.mxu0 0.0
        %513 = vmatprep.subr.mxu0 0.0
        %514 = vmatpush1.msra.mxu0 0.0
        %515 = vmatprep.subr.mxu0 0.0
        %516 = vmatpush1.msra.mxu0 0.0
        %517 = vmatprep.subr.mxu0 %v257
        %518 = vmatpush1.msra.mxu0 %v256
        %519 = vmatprep.subr.mxu0 %v249
        %520 = vmatpush1.msra.mxu0 %v248
        %521 = vmatprep.subr.mxu0 %v241
        %522 = vmatpush1.msra.mxu0 %v240
        %523 = vmatprep.subr.mxu0 %v233
        %524 = vmatpush1.msra.mxu0 %v232
        %525 = vmatprep.subr.mxu0 0.0
        %526 = vmatpush2.msra.mxu0 0.0
        %527 = vmatprep.subr.mxu0 0.0
        %528 = vmatpush2.msra.mxu0 0.0
        %529 = vmatprep.subr.mxu0 0.0
        %530 = vmatpush2.msra.mxu0 0.0
        %531 = vmatprep.subr.mxu0 0.0
        %532 = vmatpush2.msra.mxu0 0.0
        %533 = vmatprep.subr.mxu0 0.0
        %534 = vmatpush2.msra.mxu0 0.0
        %535 = vmatprep.subr.mxu0 0.0
        %536 = vmatpush2.msra.mxu0 0.0
        %537 = vmatprep.subr.mxu0 0.0
        %538 = vmatpush2.msra.mxu0 0.0
        %539 = vmatprep.subr.mxu0 0.0
        %540 = vmatpush2.msra.mxu0 0.0
        %541 = vmatprep.subr.mxu0 0.0
        %542 = vmatpush2.msra.mxu0 0.0
        %543 = vmatprep.subr.mxu0 0.0
        %544 = vmatpush2.msra.mxu0 0.0
        %545 = vmatprep.subr.mxu0 0.0
        %546 = vmatpush2.msra.mxu0 0.0
        %547 = vmatprep.subr.mxu0 0.0
        %548 = vmatpush2.msra.mxu0 0.0
        %549 = vmatprep.subr.mxu0 0.0
        %550 = vmatpush2.msra.mxu0 0.0
        %551 = vmatprep.subr.mxu0 0.0
        %552 = vmatpush2.msra.mxu0 0.0
        %553 = vmatprep.subr.mxu0 0.0
        %554 = vmatpush2.msra.mxu0 0.0
        %555 = vmatprep.subr.mxu0 0.0
        %556 = vmatpush2.msra.mxu0 0.0
        %557 = vmatprep.mubr.f32.mxu0 0.0
        %558 = vmatmul.mubr.f32.gmra.mxu0 %v304
        %v559 = vpop.f32.mrf.mxu0
        %v560 = vadd.f32 %v281, %v559
        %v561 = vpop.f32.mrf.mxu0
        %v562 = vadd.f32 %v285, %v561
        %563 = vmatprep.mubr.f32.mxu0 0.0
        %564 = vmatmul.mubr.f32.gmra.mxu0 %v307
        %v565 = vpop.f32.mrf.mxu0
        %v566 = vadd.f32 %v281, %v565
        %v567 = vpop.f32.mrf.mxu0
        %v568 = vadd.f32 %v285, %v567
        %569 = vmatprep.mubr.f32.mxu0 0.0
        %570 = vmatmul.mubr.f32.gmra.mxu0 %v310
        %v571 = vpop.f32.mrf.mxu0
        %v572 = vadd.f32 %v281, %v571
        %v573 = vpop.f32.mrf.mxu0
        %v574 = vadd.f32 %v285, %v573
        %575 = vmatprep.mubr.f32.mxu0 0.0
        %576 = vmatmul.mubr.f32.gmra.mxu0 %v313
        %v577 = vpop.f32.mrf.mxu0
        %v578 = vadd.f32 %v281, %v577
        %v579 = vpop.f32.mrf.mxu0
        %v580 = vadd.f32 %v285, %v579
        %581 = vdwg.mxu0
        %582 = vmatprep.subr.mxu0 0.0
        %583 = vmatpush1.msra.mxu0 0.0
        %584 = vmatprep.subr.mxu0 0.0
        %585 = vmatpush1.msra.mxu0 0.0
        %586 = vmatprep.subr.mxu0 0.0
        %587 = vmatpush1.msra.mxu0 0.0
        %588 = vmatprep.subr.mxu0 0.0
        %589 = vmatpush1.msra.mxu0 0.0
        %590 = vmatprep.subr.mxu0 0.0
        %591 = vmatpush1.msra.mxu0 0.0
        %592 = vmatprep.subr.mxu0 0.0
        %593 = vmatpush1.msra.mxu0 0.0
        %594 = vmatprep.subr.mxu0 0.0
        %595 = vmatpush1.msra.mxu0 0.0
        %596 = vmatprep.subr.mxu0 0.0
        %597 = vmatpush1.msra.mxu0 0.0
        %598 = vmatprep.subr.mxu0 0.0
        %599 = vmatpush1.msra.mxu0 0.0
        %600 = vmatprep.subr.mxu0 0.0
        %601 = vmatpush1.msra.mxu0 0.0
        %602 = vmatprep.subr.mxu0 0.0
        %603 = vmatpush1.msra.mxu0 0.0
        %604 = vmatprep.subr.mxu0 0.0
        %605 = vmatpush1.msra.mxu0 0.0
        %606 = vmatprep.subr.mxu0 %v259
        %607 = vmatpush1.msra.mxu0 %v258
        %608 = vmatprep.subr.mxu0 %v251
        %609 = vmatpush1.msra.mxu0 %v250
        %610 = vmatprep.subr.mxu0 %v243
        %611 = vmatpush1.msra.mxu0 %v242
        %612 = vmatprep.subr.mxu0 %v235
        %613 = vmatpush1.msra.mxu0 %v234
        %614 = vmatprep.subr.mxu0 0.0
        %615 = vmatpush2.msra.mxu0 0.0
        %616 = vmatprep.subr.mxu0 0.0
        %617 = vmatpush2.msra.mxu0 0.0
        %618 = vmatprep.subr.mxu0 0.0
        %619 = vmatpush2.msra.mxu0 0.0
        %620 = vmatprep.subr.mxu0 0.0
        %621 = vmatpush2.msra.mxu0 0.0
        %622 = vmatprep.subr.mxu0 0.0
        %623 = vmatpush2.msra.mxu0 0.0
        %624 = vmatprep.subr.mxu0 0.0
        %625 = vmatpush2.msra.mxu0 0.0
        %626 = vmatprep.subr.mxu0 0.0
        %627 = vmatpush2.msra.mxu0 0.0
        %628 = vmatprep.subr.mxu0 0.0
        %629 = vmatpush2.msra.mxu0 0.0
        %630 = vmatprep.subr.mxu0 0.0
        %631 = vmatpush2.msra.mxu0 0.0
        %632 = vmatprep.subr.mxu0 0.0
        %633 = vmatpush2.msra.mxu0 0.0
        %634 = vmatprep.subr.mxu0 0.0
        %635 = vmatpush2.msra.mxu0 0.0
        %636 = vmatprep.subr.mxu0 0.0
        %637 = vmatpush2.msra.mxu0 0.0
        %638 = vmatprep.subr.mxu0 0.0
        %639 = vmatpush2.msra.mxu0 0.0
        %640 = vmatprep.subr.mxu0 0.0
        %641 = vmatpush2.msra.mxu0 0.0
        %642 = vmatprep.subr.mxu0 0.0
        %643 = vmatpush2.msra.mxu0 0.0
        %644 = vmatprep.subr.mxu0 0.0
        %645 = vmatpush2.msra.mxu0 0.0
        %646 = vmatprep.mubr.f32.mxu0 0.0
        %647 = vmatmul.mubr.f32.gmra.mxu0 %v304
        %v648 = vpop.f32.mrf.mxu0
        %v649 = vadd.f32 %v289, %v648
        %v650 = vpop.f32.mrf.mxu0
        %v651 = vadd.f32 %v293, %v650
        %652 = vmatprep.mubr.f32.mxu0 0.0
        %653 = vmatmul.mubr.f32.gmra.mxu0 %v307
        %v654 = vpop.f32.mrf.mxu0
        %v655 = vadd.f32 %v289, %v654
        %v656 = vpop.f32.mrf.mxu0
        %v657 = vadd.f32 %v293, %v656
        %658 = vmatprep.mubr.f32.mxu0 0.0
        %659 = vmatmul.mubr.f32.gmra.mxu0 %v310
        %v660 = vpop.f32.mrf.mxu0
        %v661 = vadd.f32 %v289, %v660
        %v662 = vpop.f32.mrf.mxu0
        %v663 = vadd.f32 %v293, %v662
        %664 = vmatprep.mubr.f32.mxu0 0.0
        %665 = vmatmul.mubr.f32.gmra.mxu0 %v313
        %v666 = vpop.f32.mrf.mxu0
        %v667 = vadd.f32 %v289, %v666
        %v668 = vpop.f32.mrf.mxu0
        %v669 = vadd.f32 %v293, %v668
        %670 = vdwg.mxu0
        %v671 = vpack.c.bf16 %v382, %v382
        %v672 = vpack.c.bf16 %v384, %v384
        %v673 = vpack.c.bf16 %v471, %v471
        %v674 = vpack.c.bf16 %v473, %v473
        %v675 = vpack.c.bf16 %v388, %v388
        %v676 = vpack.c.bf16 %v390, %v390
        %v677 = vpack.c.bf16 %v477, %v477
        %v678 = vpack.c.bf16 %v479, %v479
        %v679 = vpack.c.bf16 %v394, %v394
        %v680 = vpack.c.bf16 %v396, %v396
        %v681 = vpack.c.bf16 %v483, %v483
        %v682 = vpack.c.bf16 %v485, %v485
        %v683 = vpack.c.bf16 %v400, %v400
        %v684 = vpack.c.bf16 %v402, %v402
        %v685 = vpack.c.bf16 %v489, %v489
        %v686 = vpack.c.bf16 %v491, %v491
        %v703 = vunpack.c.l.b16 %v671
        %v704 = vunpack.c.l.b16 %v672
        %v705 = vunpack.c.l.b16 %v673
        %v706 = vunpack.c.l.b16 %v674
        %v707 = vunpack.c.l.b16 %v675
        %v708 = vunpack.c.l.b16 %v676
        %v709 = vunpack.c.l.b16 %v677
        %v710 = vunpack.c.l.b16 %v678
        %v711 = vunpack.c.l.b16 %v679
        %v712 = vunpack.c.l.b16 %v680
        %v713 = vunpack.c.l.b16 %v681
        %v714 = vunpack.c.l.b16 %v682
        %v715 = vunpack.c.l.b16 %v683
        %v716 = vunpack.c.l.b16 %v684
        %v717 = vunpack.c.l.b16 %v685
        %v718 = vunpack.c.l.b16 %v686
        %v719 = vpack.c.b16 %v704, %v703
        %v720 = vpack.c.b16 %v706, %v705
        %v721 = vpack.c.b16 %v708, %v707
        %v722 = vpack.c.b16 %v710, %v709
        %v723 = vpack.c.b16 %v712, %v711
        %v724 = vpack.c.b16 %v714, %v713
        %v725 = vpack.c.b16 %v716, %v715
        %v726 = vpack.c.b16 %v718, %v717
        %735 = vst [vmem:[%s210] sm:$0xff] %v719
        %736 = vst [vmem:[%s210 + $0x8] sm:$0xff] %v720
        %737 = vst [vmem:[%s210 + $0x10] sm:$0xff] %v721
        %738 = vst [vmem:[%s210 + $0x18] sm:$0xff] %v722
        %739 = vst [vmem:[%s210 + $0x20] sm:$0xff] %v723
        %740 = vst [vmem:[%s210 + $0x28] sm:$0xff] %v724
        %741 = vst [vmem:[%s210 + $0x30] sm:$0xff] %v725
        %742 = vst [vmem:[%s210 + $0x38] sm:$0xff] %v726
        %v743 = vpack.c.bf16 %v560, %v560
        %v744 = vpack.c.bf16 %v562, %v562
        %v745 = vpack.c.bf16 %v649, %v649
        %v746 = vpack.c.bf16 %v651, %v651
        %v747 = vpack.c.bf16 %v566, %v566
        %v748 = vpack.c.bf16 %v568, %v568
        %v749 = vpack.c.bf16 %v655, %v655
        %v750 = vpack.c.bf16 %v657, %v657
        %v751 = vpack.c.bf16 %v572, %v572
        %v752 = vpack.c.bf16 %v574, %v574
        %v753 = vpack.c.bf16 %v661, %v661
        %v754 = vpack.c.bf16 %v663, %v663
        %v755 = vpack.c.bf16 %v578, %v578
        %v756 = vpack.c.bf16 %v580, %v580
        %v757 = vpack.c.bf16 %v667, %v667
        %v758 = vpack.c.bf16 %v669, %v669
        %v775 = vunpack.c.l.b16 %v743
        %v776 = vunpack.c.l.b16 %v744
        %v777 = vunpack.c.l.b16 %v745
        %v778 = vunpack.c.l.b16 %v746
        %v779 = vunpack.c.l.b16 %v747
        %v780 = vunpack.c.l.b16 %v748
        %v781 = vunpack.c.l.b16 %v749
        %v782 = vunpack.c.l.b16 %v750
        %v783 = vunpack.c.l.b16 %v751
        %v784 = vunpack.c.l.b16 %v752
        %v785 = vunpack.c.l.b16 %v753
        %v786 = vunpack.c.l.b16 %v754
        %v787 = vunpack.c.l.b16 %v755
        %v788 = vunpack.c.l.b16 %v756
        %v789 = vunpack.c.l.b16 %v757
        %v790 = vunpack.c.l.b16 %v758
        %v791 = vpack.c.b16 %v776, %v775
        %v792 = vpack.c.b16 %v778, %v777
        %v793 = vpack.c.b16 %v780, %v779
        %v794 = vpack.c.b16 %v782, %v781
        %v795 = vpack.c.b16 %v784, %v783
        %v796 = vpack.c.b16 %v786, %v785
        %v797 = vpack.c.b16 %v788, %v787
        %v798 = vpack.c.b16 %v790, %v789
        %807 = vst [vmem:[%s217] sm:$0xff] %v791
        %808 = vst [vmem:[%s217 + $0x8] sm:$0xff] %v792
        %809 = vst [vmem:[%s217 + $0x10] sm:$0xff] %v793
        %810 = vst [vmem:[%s217 + $0x18] sm:$0xff] %v794
        %811 = vst [vmem:[%s217 + $0x20] sm:$0xff] %v795
        %812 = vst [vmem:[%s217 + $0x28] sm:$0xff] %v796
        %813 = vst [vmem:[%s217 + $0x30] sm:$0xff] %v797
        %814 = vst [vmem:[%s217 + $0x38] sm:$0xff] %v798
        %s815 = sand.u32 %s99, 1
        %s816 = scalar_lea.sflag [#allocation4], %s815
        %s817 = sand.u32 %s99, 1
        %s818 = smul.addr %s817, 64
        %s819 = scalar_lea.vmem [#allocation5], %s818
        %s820 = sand.u32 %s125, 1
        %s821 = scalar_lea.sflag [#allocation7], %s820
        %s822 = sand.u32 %s125, 1
        %s823 = smul.addr %s822, 64
        %s824 = scalar_lea.vmem [#allocation6], %s823
        // Predicated region
        $region37: #{tpu_custom_call.1} parent=31 // pred_check
          %p825 = pneg %p109
        $region38: #{tpu_custom_call.1} parent=31 // pred_check_branch
          %827 = sbr.rel (%p825) target = $region40
        $region39: #{tpu_custom_call.1} parent=31 // pred_region
          %s829 = ssub.s32 1024, 1024
          %830 = vsyncadd %s816, %s829
          %s831 = smul.addr %s23, 16
          %s832 = smul.addr %s831, 64
          %s833 = scalar_lea.hbm %s3, %s832
          %s834 = sshll.u32 %s819, 4
          %s835 = int_to_ptr.vmem [resolvable:$true] %s834
          %840 = dma.vmem_to_hbm [thread:$0]  %s835, 1024, %s833, %s816, 256, 256, 16
        $region40: #{tpu_custom_call.1} parent=31 // pred_fallthru
          _
        // Predicated region
        $region41: #{tpu_custom_call.1} parent=31 // pred_check
          %p841 = pneg %p135
        $region42: #{tpu_custom_call.1} parent=31 // pred_check_branch
          %843 = sbr.rel (%p841) target = $region44
        $region43: #{tpu_custom_call.1} parent=31 // pred_region
          %s845 = ssub.s32 1024, 1024
          %846 = vsyncadd %s821, %s845
          %s847 = smul.addr %s23, 16
          %s848 = smul.addr %s847, 64
          %s849 = scalar_lea.hbm %s4, %s848
          %s850 = sshll.u32 %s824, 4
          %s851 = int_to_ptr.vmem [resolvable:$true] %s850
          %856 = dma.vmem_to_hbm [thread:$0]  %s851, 1024, %s849, %s821, 256, 256, 16
        $region44: #{tpu_custom_call.1} parent=31 // pred_fallthru
          _
      $region32: #{tpu_custom_call.1} parent=5 // pred_fallthru
        _
      %p857 = scmp.le.s32.totalorder 2, %s18
      // Predicated region
      $region45: #{tpu_custom_call.1} parent=5 // pred_check
        %p858 = pneg %p857
      $region46: #{tpu_custom_call.1} parent=5 // pred_check_branch
        %860 = sbr.rel (%p858) target = $region48
      $region47: #{tpu_custom_call.1} parent=5 // pred_region
        %s861 = ssub.s32 %s18, 2
        // Predicated region
        $region49: #{tpu_custom_call.1} parent=47 // pred_check
          %p862 = pneg %p115
        $region50: #{tpu_custom_call.1} parent=47 // pred_check_branch
          %864 = sbr.rel (%p862) target = $region52
        $region51: #{tpu_custom_call.1} parent=47 // pred_region
          %s865 = sand.u32 %s100, 1
          %s866 = scalar_lea.sflag [#allocation4], %s865
          %s867 = sand.u32 %s100, 1
          %s868 = smul.addr %s867, 64
          %s869 = scalar_lea.vmem [#allocation5], %s868
          %870 = dma.done %s866, 1024
        $region52: #{tpu_custom_call.1} parent=47 // pred_fallthru
          _
        // Predicated region
        $region53: #{tpu_custom_call.1} parent=47 // pred_check
          %p871 = pneg %p141
        $region54: #{tpu_custom_call.1} parent=47 // pred_check_branch
          %873 = sbr.rel (%p871) target = $region56
        $region55: #{tpu_custom_call.1} parent=47 // pred_region
          %s874 = sand.u32 %s126, 1
          %s875 = scalar_lea.sflag [#allocation7], %s874
          %s876 = sand.u32 %s126, 1
          %s877 = smul.addr %s876, 64
          %s878 = scalar_lea.vmem [#allocation6], %s877
          %879 = dma.done %s875, 1024
        $region56: #{tpu_custom_call.1} parent=47 // pred_fallthru
          _
      $region48: #{tpu_custom_call.1} parent=5 // pred_fallthru
        _
    $region6: #{tpu_custom_call.1} parent=1 // loop_footer
      %s22 = sadd.s32 1, %s18
    $region7: #{tpu_custom_call.1} parent=1 // loop_footer_branch
      %17 = sbr.rel target = $region3
    $region8: #{tpu_custom_call.1} parent=1 // loop_exit
      _
    %880 = vsyncpa [#allocation3], 1
    %s881 = scalar_lea.sflag [#allocation3], 1
    %882 = vsyncpa %s881, 1
    %883 = vsyncpa [#allocation4], 1
    %s884 = scalar_lea.sflag [#allocation4], 1
    %885 = vsyncpa %s884, 1
    %886 = vsyncpa [#allocation7], 1
    %s887 = scalar_lea.sflag [#allocation7], 1
    %888 = vsyncpa %s887, 1

</llo_original>
